<compile_context>
chip_gen: v5e
topology: v5e:2x2
jax: 0.10.0
libtpu: 0.0.40
codegen_flags: <defaults>
</compile_context>

<pallas_src>
import jax
import jax.numpy as jnp
from jax.experimental import pallas as pl
from jax.experimental.pallas import tpu as pltpu


def _round_up(n, m):
    return ((n + m - 1) // m) * m


def _mlp_kernel(x_ref, w1_ref, b1_ref, w2_ref, b2_ref, wo_ref, bo_ref, o_ref):
    """One (TB, F) row block: (Linear+ReLU) x 2 -> Linear.

    Normalization is pre-folded into w1/b1 (prepare_params), so x streams
    straight from HBM as f32 and is cast to bf16 just before the MXU.  All
    matmuls are bf16 x bf16 with f32 accumulation; biases and ReLU run in f32.
    Only the real K logit columns are stored.
    """
    x = x_ref[...].astype(jnp.bfloat16)                      # VPU cast, cheap

    # hidden layer 1: Linear(F, Hp) + ReLU
    h = jnp.dot(x, w1_ref[...], preferred_element_type=jnp.float32)
    h = jnp.maximum(h + b1_ref[...], 0.0)

    # hidden layer 2: Linear(Hp, Hp) + ReLU
    h = jnp.dot(h.astype(w2_ref.dtype), w2_ref[...],
                preferred_element_type=jnp.float32)
    h = jnp.maximum(h + b2_ref[...], 0.0)

    # output layer: Linear(Hp, Kp) -> keep only the real K columns
    o = jnp.dot(h.astype(wo_ref.dtype), wo_ref[...],
                preferred_element_type=jnp.float32)
    k = o_ref.shape[1]
    o_ref[...] = (o[:, :k] + bo_ref[...]).astype(o_ref.dtype)


def prepare_params(params, mean, std, lanes=128):
    """One-time weight prep (hoisted out of the per-call forward):
    fold (x - mean)/(std + 1e-8) into layer 1, pad hidden/class dims to lane
    width, cast matmul operands to bf16 (biases stay f32)."""
    F, H = params["w1"].shape
    K = params["wo"].shape[1]
    Hp = _round_up(H, lanes)
    Kp = _round_up(K, lanes)

    inv_std = 1.0 / (std + 1e-8)
    w1_fold = params["w1"] * inv_std
    b1_fold = params["b1"] - (mean * inv_std) * jnp.sum(params["w1"], axis=0)

    def pad2(a, rows, cols):
        return jnp.pad(a, ((0, rows - a.shape[0]), (0, cols - a.shape[1])))

    return {
        "w1": pad2(w1_fold, F, Hp).astype(jnp.bfloat16),
        "b1": pad2(b1_fold.reshape(1, H), 1, Hp).astype(jnp.float32),
        "w2": pad2(params["w2"], Hp, Hp).astype(jnp.bfloat16),
        "b2": pad2(params["b2"].reshape(1, H), 1, Hp).astype(jnp.float32),
        "wo": pad2(params["wo"], Hp, Kp).astype(jnp.bfloat16),
        "bo": params["bo"].reshape(1, K).astype(jnp.float32),   # unpadded
    }


@jax.jit
def mynetwork_forward(x, prepped):
    """
    x       : (B, C, H, W) float32  (NCHW, as in the PyTorch module)
    prepped : output of prepare_params (pre-padded bf16 weights / f32 biases)
    returns : logits (B, K) float32
    """
    B = x.shape[0]
    x_flat = x.reshape(B, -1).astype(jnp.float32)   # glue: x.view(B, -1)
    F = x_flat.shape[1]
    Hp = prepped["w1"].shape[1]
    Kp = prepped["wo"].shape[1]
    K = prepped["bo"].shape[1]

    # ---- batch tile selection (B is a static shape -> plain Python) ----
    TB = min(2048, _round_up(B, 16))                # amortize ~0.35us/step
    if B >= 32 and pl.cdiv(B, TB) < 2:
        # guarantee >=2 grid blocks so v7x's two TensorCores both get work
        TB = _round_up(pl.cdiv(B, 2), 16)
    grid = (pl.cdiv(B, TB),)                        # ragged last block, masked

    resident = lambda i: (0, 0)   # weights/biases: same block every grid step

    # advisory cost hint so XLA schedules surrounding ops around this
    # HBM-bound custom call sensibly
    w_bytes = sum(int(a.size) * a.dtype.itemsize for a in prepped.values())
    cost = pl.CostEstimate(
        flops=2 * B * (F * Hp + Hp * Hp + Hp * Kp),
        transcendentals=0,
        bytes_accessed=B * F * 4 + B * K * 4 + w_bytes,
    )

    out = pl.pallas_call(
        _mlp_kernel,
        out_shape=jax.ShapeDtypeStruct((B, K), jnp.float32),
        grid=grid,
        in_specs=[
            pl.BlockSpec((TB, F), lambda i: (i, 0)),   # x rows stream (f32)
            pl.BlockSpec((F, Hp), resident),           # w1 (folded norm, bf16)
            pl.BlockSpec((1, Hp), resident),           # b1 (f32 row)
            pl.BlockSpec((Hp, Hp), resident),          # w2
            pl.BlockSpec((1, Hp), resident),           # b2
            pl.BlockSpec((Hp, Kp), resident),          # wo
            pl.BlockSpec((1, K), resident),            # bo (unpadded, f32)
        ],
        out_specs=pl.BlockSpec((TB, K), lambda i: (i, 0)),
        compiler_params=pltpu.CompilerParams(
            dimension_semantics=("parallel",),          # shard batch over TCs
            vmem_limit_bytes=48 * 1024 * 1024,          # safe on v7x 64 MiB
        ),
        cost_estimate=cost,
    )(x_flat, prepped["w1"], prepped["b1"], prepped["w2"], prepped["b2"],
      prepped["wo"], prepped["bo"])

    return out


def init_params(key, input_size, hidden_size, num_classes):
    """Deterministic parameter init (mirrors nn.Linear; stored (in, out))."""
    k1, k2, k3, k4, k5, k6 = jax.random.split(key, 6)

    def linear(kw, kb, fan_in, fan_out):
        bound = 1.0 / jnp.sqrt(fan_in)
        w = jax.random.uniform(kw, (fan_in, fan_out), jnp.float32, -bound, bound)
        b = jax.random.uniform(kb, (fan_out,), jnp.float32, -bound, bound)
        return w, b

    w1, b1 = linear(k1, k2, input_size, hidden_size)
    w2, b2 = linear(k3, k4, hidden_size, hidden_size)
    wo, bo = linear(k5, k6, hidden_size, num_classes)
    return {"w1": w1, "b1": b1, "w2": w2, "b2": b2, "wo": wo, "bo": bo}


def reference_forward(x, params, mean, std):
    """Pure-JAX f32 reference of the PyTorch forward."""
    B = x.shape[0]
    xf = x.reshape(B, -1).astype(jnp.float32)
    xf = (xf - mean) / (std + 1e-8)
    h = jnp.maximum(xf @ params["w1"] + params["b1"], 0.0)
    h = jnp.maximum(h @ params["w2"] + params["b2"], 0.0)
    return h @ params["wo"] + params["bo"]


def reference_forward_bf16(x, params, mean, std):
    """Reference with the kernel's exact numerics (folded norm, bf16 operands,
    f32 accumulation) for a tight correctness check."""
    B = x.shape[0]
    xf = x.reshape(B, -1).astype(jnp.float32)
    inv_std = 1.0 / (std + 1e-8)
    w1 = (params["w1"] * inv_std).astype(jnp.bfloat16)
    b1 = params["b1"] - (mean * inv_std) * jnp.sum(params["w1"], axis=0)
    h = jnp.dot(xf.astype(jnp.bfloat16), w1,
                preferred_element_type=jnp.float32) + b1
    h = jnp.maximum(h, 0.0).astype(jnp.bfloat16)
    h = jnp.dot(h, params["w2"].astype(jnp.bfloat16),
                preferred_element_type=jnp.float32) + params["b2"]
    h = jnp.maximum(h, 0.0).astype(jnp.bfloat16)
    return (jnp.dot(h, params["wo"].astype(jnp.bfloat16),
                    preferred_element_type=jnp.float32) + params["bo"])


if __name__ == "__main__":
    # Config equivalent: num_unit=32, num_class=10, num_hidden=2, activ_type='relu'
    # TODO(synk): tanh activation path (config.activ_type != 'relu') and a
    #             generic num_hidden loop are not implemented (kernel is
    #             specialized to the 2-hidden-layer ReLU config).
    B, C, Hs, Ws = 2, 4, 16, 16          # small NCHW input
    hidden_size = 32
    num_classes = 10
    input_size = C * Hs * Ws             # 1024

    key = jax.random.PRNGKey(0)
    kx, kp = jax.random.split(key)
    x = jax.random.normal(kx, (B, C, Hs, Ws), jnp.float32)
    params = init_params(kp, input_size, hidden_size, num_classes)

    mean = jnp.float32(0.4734)           # scalar normalization (CIFAR10-ish)
    std = jnp.float32(0.2516)

    prepped = prepare_params(params, mean, std)     # one-time weight prep
    out = jax.block_until_ready(mynetwork_forward(x, prepped))
    assert out.shape == (B, num_classes)

    # Tight check vs a reference with identical bf16/f32-acc numerics.
    ref_bf16 = reference_forward_bf16(x, params, mean, std)
    assert jnp.allclose(out, ref_bf16, atol=1e-2, rtol=1e-2), \
        "mismatch vs bf16-semantics reference"

    # Loose sanity check vs the exact-f32 PyTorch-semantics reference
    # (difference is only bf16 quantization of activations/weights).
    ref_f32 = reference_forward(x, params, mean, std)
    assert jnp.allclose(out, ref_f32, atol=2e-1, rtol=2e-1), \
        "mismatch vs f32 reference"

    print("KERNEL_OK")
</pallas_src>

<mosaic_0001>
module attributes {stable_mosaic.version = 11 : i64} {
  func.func @_mlp_kernel(%arg0: i32, %arg1: memref<16x1024xf32, #tpu.memory_space<vmem>>, %arg2: memref<1024x128xbf16, #tpu.memory_space<vmem>>, %arg3: memref<1x128xf32, #tpu.memory_space<vmem>>, %arg4: memref<128x128xbf16, #tpu.memory_space<vmem>>, %arg5: memref<1x128xf32, #tpu.memory_space<vmem>>, %arg6: memref<128x128xbf16, #tpu.memory_space<vmem>>, %arg7: memref<1x10xf32, #tpu.memory_space<vmem>>, %arg8: memref<16x10xf32, #tpu.memory_space<vmem>>) attributes {dimension_semantics = [#tpu.dimension_semantics<parallel>], iteration_bounds = array<i64: 1>, scalar_prefetch = 0 : i64, scratch_operands = 0 : i64, tpu.core_type = #tpu.core_type<tc>, window_params = [{transform_indices = @transform_0, window_bounds = array<i64: 16, 1024>}, {pipeline_mode = #tpu.pipeline_mode<synchronous>, transform_indices = @transform_1, window_bounds = array<i64: 1024, 128>}, {pipeline_mode = #tpu.pipeline_mode<synchronous>, transform_indices = @transform_2, window_bounds = array<i64: 1, 128>}, {pipeline_mode = #tpu.pipeline_mode<synchronous>, transform_indices = @transform_3, window_bounds = array<i64: 128, 128>}, {pipeline_mode = #tpu.pipeline_mode<synchronous>, transform_indices = @transform_4, window_bounds = array<i64: 1, 128>}, {pipeline_mode = #tpu.pipeline_mode<synchronous>, transform_indices = @transform_5, window_bounds = array<i64: 128, 128>}, {pipeline_mode = #tpu.pipeline_mode<synchronous>, transform_indices = @transform_6, window_bounds = array<i64: 1, 10>}, {transform_indices = @transform_7, window_bounds = array<i64: 16, 10>}]} {
    %c0 = arith.constant 0 : index
    %c0_0 = arith.constant 0 : index
    %0 = vector.load %arg1[%c0, %c0_0] : memref<16x1024xf32, #tpu.memory_space<vmem>>, vector<16x1024xf32>
    %1 = arith.truncf %0 : vector<16x1024xf32> to vector<16x1024xbf16>
    %c0_1 = arith.constant 0 : index
    %c0_2 = arith.constant 0 : index
    %2 = vector.load %arg2[%c0_1, %c0_2] : memref<1024x128xbf16, #tpu.memory_space<vmem>>, vector<1024x128xbf16>
    %cst = arith.constant dense<0.000000e+00> : vector<16x128xf32>
    %3 = tpu.matmul %1, %2, %cst {dimension_numbers = #tpu.dot_dimension_numbers<[1], [0], [0], [1], [0, 0, 1, 1], [], []>} : vector<16x1024xbf16>, vector<1024x128xbf16>, vector<16x128xf32> -> vector<16x128xf32>
    %c0_3 = arith.constant 0 : index
    %c0_4 = arith.constant 0 : index
    %4 = vector.load %arg3[%c0_3, %c0_4] : memref<1x128xf32, #tpu.memory_space<vmem>>, vector<1x128xf32>
    %5 = vector.broadcast %4 : vector<1x128xf32> to vector<16x128xf32>
    %6 = arith.addf %3, %5 : vector<16x128xf32>
    %cst_5 = arith.constant 0.000000e+00 : f32
    %7 = vector.broadcast %cst_5 : f32 to vector<16x128xf32>
    %8 = arith.maximumf %6, %7 : vector<16x128xf32>
    %9 = arith.truncf %8 : vector<16x128xf32> to vector<16x128xbf16>
    %c0_6 = arith.constant 0 : index
    %c0_7 = arith.constant 0 : index
    %10 = vector.load %arg4[%c0_6, %c0_7] : memref<128x128xbf16, #tpu.memory_space<vmem>>, vector<128x128xbf16>
    %cst_8 = arith.constant dense<0.000000e+00> : vector<16x128xf32>
    %11 = tpu.matmul %9, %10, %cst_8 {dimension_numbers = #tpu.dot_dimension_numbers<[1], [0], [0], [1], [0, 0, 1, 1], [], []>} : vector<16x128xbf16>, vector<128x128xbf16>, vector<16x128xf32> -> vector<16x128xf32>
    %c0_9 = arith.constant 0 : index
    %c0_10 = arith.constant 0 : index
    %12 = vector.load %arg5[%c0_9, %c0_10] : memref<1x128xf32, #tpu.memory_space<vmem>>, vector<1x128xf32>
    %13 = vector.broadcast %12 : vector<1x128xf32> to vector<16x128xf32>
    %14 = arith.addf %11, %13 : vector<16x128xf32>
    %cst_11 = arith.constant 0.000000e+00 : f32
    %15 = vector.broadcast %cst_11 : f32 to vector<16x128xf32>
    %16 = arith.maximumf %14, %15 : vector<16x128xf32>
    %17 = arith.truncf %16 : vector<16x128xf32> to vector<16x128xbf16>
    %c0_12 = arith.constant 0 : index
    %c0_13 = arith.constant 0 : index
    %18 = vector.load %arg6[%c0_12, %c0_13] : memref<128x128xbf16, #tpu.memory_space<vmem>>, vector<128x128xbf16>
    %cst_14 = arith.constant dense<0.000000e+00> : vector<16x128xf32>
    %19 = tpu.matmul %17, %18, %cst_14 {dimension_numbers = #tpu.dot_dimension_numbers<[1], [0], [0], [1], [0, 0, 1, 1], [], []>} : vector<16x128xbf16>, vector<128x128xbf16>, vector<16x128xf32> -> vector<16x128xf32>
    %20 = vector.extract_strided_slice %19 {offsets = [0, 0], sizes = [16, 10], strides = [1, 1]} : vector<16x128xf32> to vector<16x10xf32>
    %c0_15 = arith.constant 0 : index
    %c0_16 = arith.constant 0 : index
    %21 = vector.load %arg7[%c0_15, %c0_16] : memref<1x10xf32, #tpu.memory_space<vmem>>, vector<1x10xf32>
    %22 = vector.broadcast %21 : vector<1x10xf32> to vector<16x10xf32>
    %23 = arith.addf %20, %22 : vector<16x10xf32>
    %c0_17 = arith.constant 0 : index
    %c0_18 = arith.constant 0 : index
    %24 = vector.load %arg8[%c0_17, %c0_18] : memref<16x10xf32, #tpu.memory_space<vmem>>, vector<16x10xf32>
    tpu.vector_store %arg8[%c0_17, %c0_18], %23 {strides = array<i32>} : memref<16x10xf32, #tpu.memory_space<vmem>>, vector<16x10xf32>,
    return
  }
  func.func @transform_0(%arg0: i32) -> (i32, i32) {
    %c0_i32 = arith.constant 0 : i32
    %c0_i32_0 = arith.constant 0 : i32
    return %arg0, %c0_i32 : i32, i32
  }
  func.func @transform_1(%arg0: i32) -> (i32, i32) {
    %c0_i32 = arith.constant 0 : i32
    %c0_i32_0 = arith.constant 0 : i32
    %c0_i32_1 = arith.constant 0 : i32
    return %c0_i32, %c0_i32_0 : i32, i32
  }
  func.func @transform_2(%arg0: i32) -> (i32, i32) {
    %c0_i32 = arith.constant 0 : i32
    %c0_i32_0 = arith.constant 0 : i32
    %c0_i32_1 = arith.constant 0 : i32
    return %c0_i32, %c0_i32_0 : i32, i32
  }
  func.func @transform_3(%arg0: i32) -> (i32, i32) {
    %c0_i32 = arith.constant 0 : i32
    %c0_i32_0 = arith.constant 0 : i32
    %c0_i32_1 = arith.constant 0 : i32
    return %c0_i32, %c0_i32_0 : i32, i32
  }
  func.func @transform_4(%arg0: i32) -> (i32, i32) {
    %c0_i32 = arith.constant 0 : i32
    %c0_i32_0 = arith.constant 0 : i32
    %c0_i32_1 = arith.constant 0 : i32
    return %c0_i32, %c0_i32_0 : i32, i32
  }
  func.func @transform_5(%arg0: i32) -> (i32, i32) {
    %c0_i32 = arith.constant 0 : i32
    %c0_i32_0 = arith.constant 0 : i32
    %c0_i32_1 = arith.constant 0 : i32
    return %c0_i32, %c0_i32_0 : i32, i32
  }
  func.func @transform_6(%arg0: i32) -> (i32, i32) {
    %c0_i32 = arith.constant 0 : i32
    %c0_i32_0 = arith.constant 0 : i32
    %c0_i32_1 = arith.constant 0 : i32
    return %c0_i32, %c0_i32_0 : i32, i32
  }
  func.func @transform_7(%arg0: i32) -> (i32, i32) {
    %c0_i32 = arith.constant 0 : i32
    %c0_i32_0 = arith.constant 0 : i32
    return %arg0, %c0_i32 : i32, i32
  }
}

</mosaic_0001>

<llo_original>
// kernel: mynetwork_forward.1
$region0: #{mynetwork_forward.1}
  #allocation0 [shape = 'u32[]', space=smem, size = 0x4, offset = 0x4, fixed_abs, tag = 'smem constant byte address 0x4 - core index']
  #allocation1 [shape = 'u32[72,128]{1,0:T(1,128)}', space=vmem, size = 0x9000, scoped, tag = 'internal scratch']
  %s0 = inlined_call_operand.vmem [shape: f32[2,1024], index: 0, kind: input, shape index: {}]
  %s1 = inlined_call_operand.hbm [shape: bf16[1024,128], index: 1, kind: input, shape index: {}]
  %s2 = inlined_call_operand.vmem [shape: f32[1,128], index: 2, kind: input, shape index: {}]
  %s3 = inlined_call_operand.vmem [shape: bf16[128,128], index: 3, kind: input, shape index: {}]
  %s4 = inlined_call_operand.vmem [shape: f32[1,128], index: 4, kind: input, shape index: {}]
  %s5 = inlined_call_operand.vmem [shape: bf16[128,128], index: 5, kind: input, shape index: {}]
  %s6 = inlined_call_operand.vmem [shape: f32[1,10], index: 6, kind: input, shape index: {}]
  %s7 = inlined_call_operand.hbm [shape: f32[2,10], index: 7, kind: output, shape index: {}]
  %s8 = sld [smem:[#allocation0]]
  $region42: #{mynetwork_forward.1} parent=0
    _
  %s10 = ssub.s32 1, %s8
  %s11 = scalar_select 0, %s10, %s8
  $region1: #{mynetwork_forward.1} parent=0
    #allocation2 [shape = 'u8[262144]{0}', space=vmem, size = 0x40000, scoped, tag = 'input window, operand 1, single buffered']
    #allocation3 [shape = 's32[1]{0}', space=sflag, size = 0x4, scoped, tag = 'scoped memory for mynetwork_forward.1']
    #allocation4 [shape = 's32[1]{0}', space=sflag, size = 0x4, scoped, tag = 'scoped memory for mynetwork_forward.1']
    #allocation5 [shape = 'u8[8192]{0}', space=vmem, size = 0x2000, scoped, tag = 'output window, operand 0, single buffered']
    %12 = vsyncpa [#allocation3], 0
    %13 = vsyncpa [#allocation4], 0
    // Predicated region
    $region2: #{mynetwork_forward.1} parent=1 // pred_check
      _
    $region3: #{mynetwork_forward.1} parent=1 // pred_check_branch
      %15 = sbr.rel (0) target = $region5
    $region4: #{mynetwork_forward.1} parent=1 // pred_region
      _
    $region5: #{mynetwork_forward.1} parent=1 // pred_fallthru
      _
    // Predicated region
    $region6: #{mynetwork_forward.1} parent=1 // pred_check
      _
    $region7: #{mynetwork_forward.1} parent=1 // pred_check_branch
      %17 = sbr.rel (0) target = $region9
    $region8: #{mynetwork_forward.1} parent=1 // pred_region
      %19 = vsyncadd [#allocation3], 0
      %s20 = sshll.u32 %s1, 4
      %s21 = int_to_ptr.hbm [resolvable:$true] %s20
      %s22 = sshll.u32 [#allocation2], 4
      %s23 = int_to_ptr.vmem [resolvable:$true] %s22
      %28 = dma.hbm_to_vmem [thread:$0]  %s21, 8192, %s23, [#allocation3], 64, 64, 4
    $region9: #{mynetwork_forward.1} parent=1 // pred_fallthru
      _
    // Predicated region
    $region10: #{mynetwork_forward.1} parent=1 // pred_check
      _
    $region11: #{mynetwork_forward.1} parent=1 // pred_check_branch
      %30 = sbr.rel (0) target = $region13
    $region12: #{mynetwork_forward.1} parent=1 // pred_region
      _
    $region13: #{mynetwork_forward.1} parent=1 // pred_fallthru
      _
    // Predicated region
    $region14: #{mynetwork_forward.1} parent=1 // pred_check
      _
    $region15: #{mynetwork_forward.1} parent=1 // pred_check_branch
      %32 = sbr.rel (0) target = $region17
    $region16: #{mynetwork_forward.1} parent=1 // pred_region
      _
    $region17: #{mynetwork_forward.1} parent=1 // pred_fallthru
      _
    // Predicated region
    $region18: #{mynetwork_forward.1} parent=1 // pred_check
      _
    $region19: #{mynetwork_forward.1} parent=1 // pred_check_branch
      %34 = sbr.rel (0) target = $region21
    $region20: #{mynetwork_forward.1} parent=1 // pred_region
      _
    $region21: #{mynetwork_forward.1} parent=1 // pred_fallthru
      _
    // Predicated region
    $region22: #{mynetwork_forward.1} parent=1 // pred_check
      _
    $region23: #{mynetwork_forward.1} parent=1 // pred_check_branch
      %36 = sbr.rel (0) target = $region25
    $region24: #{mynetwork_forward.1} parent=1 // pred_region
      _
    $region25: #{mynetwork_forward.1} parent=1 // pred_fallthru
      _
    // Predicated region
    $region26: #{mynetwork_forward.1} parent=1 // pred_check
      _
    $region27: #{mynetwork_forward.1} parent=1 // pred_check_branch
      %38 = sbr.rel (0) target = $region29
    $region28: #{mynetwork_forward.1} parent=1 // pred_region
      _
    $region29: #{mynetwork_forward.1} parent=1 // pred_fallthru
      _
    // Predicated region
    $region30: #{mynetwork_forward.1} parent=1 // pred_check
      _
    $region31: #{mynetwork_forward.1} parent=1 // pred_check_branch
      %40 = sbr.rel (0) target = $region33
    $region32: #{mynetwork_forward.1} parent=1 // pred_region
      %42 = dma.done [#allocation3], 8192
    $region33: #{mynetwork_forward.1} parent=1 // pred_fallthru
      _
    %v43 = vld [vmem:[%s0] sm:$0xff]
    %v44 = vld [vmem:[%s0 + $0x8] sm:$0xff]
    %v45 = vld [vmem:[%s0 + $0x10] sm:$0xff]
    %v46 = vld [vmem:[%s0 + $0x18] sm:$0xff]
    %v47 = vld [vmem:[%s0 + $0x20] sm:$0xff]
    %v48 = vld [vmem:[%s0 + $0x28] sm:$0xff]
    %v49 = vld [vmem:[%s0 + $0x30] sm:$0xff]
    %v50 = vld [vmem:[%s0 + $0x38] sm:$0xff]
    %v51 = vld [vmem:[%s0 + $0x40] sm:$0xff]
    %v52 = vld [vmem:[%s0 + $0x48] sm:$0xff]
    %v53 = vld [vmem:[%s0 + $0x50] sm:$0xff]
    %v54 = vld [vmem:[%s0 + $0x58] sm:$0xff]
    %v55 = vld [vmem:[%s0 + $0x60] sm:$0xff]
    %v56 = vld [vmem:[%s0 + $0x68] sm:$0xff]
    %v57 = vld [vmem:[%s0 + $0x70] sm:$0xff]
    %v58 = vld [vmem:[%s0 + $0x78] sm:$0xff]
    %75 = vst [vmem:[#allocation1] ss:$4 sm:$0xff] %v43
    %s76 = scalar_lea.vmem [#allocation1], 1
    %77 = vst [vmem:[%s76] ss:$4 sm:$0xff] %v45
    %s78 = scalar_lea.vmem [#allocation1], 2
    %79 = vst [vmem:[%s78] ss:$4 sm:$0xff] %v47
    %s80 = scalar_lea.vmem [#allocation1], 3
    %81 = vst [vmem:[%s80] ss:$4 sm:$0xff] %v49
    %s82 = scalar_lea.vmem [#allocation1], 32
    %83 = vst [vmem:[%s82] ss:$4 sm:$0xff] %v44
    %s84 = scalar_lea.vmem [#allocation1], 33
    %85 = vst [vmem:[%s84] ss:$4 sm:$0xff] %v46
    %s86 = scalar_lea.vmem [#allocation1], 34
    %87 = vst [vmem:[%s86] ss:$4 sm:$0xff] %v48
    %s88 = scalar_lea.vmem [#allocation1], 35
    %89 = vst [vmem:[%s88] ss:$4 sm:$0xff] %v50
    %v90 = vld.sshfl [vmem:[#allocation1] sm:$0xff pattern:$0x73625140]
    %v91 = vld.sshfl [vmem:[#allocation1 + $0x8] sm:$0xff pattern:$0x73625140]
    %v92 = vld.sshfl [vmem:[#allocation1 + $0x10] sm:$0xff pattern:$0x73625140]
    %v93 = vld.sshfl [vmem:[#allocation1 + $0x18] sm:$0xff pattern:$0x73625140]
    %v94 = vld.sshfl [vmem:[#allocation1 + $0x20] sm:$0xff pattern:$0x73625140]
    %v95 = vld.sshfl [vmem:[#allocation1 + $0x28] sm:$0xff pattern:$0x73625140]
    %v96 = vld.sshfl [vmem:[#allocation1 + $0x30] sm:$0xff pattern:$0x73625140]
    %v97 = vld.sshfl [vmem:[#allocation1 + $0x38] sm:$0xff pattern:$0x73625140]
    %98 = vst [vmem:[#allocation1] ss:$4 sm:$0xff] %v51
    %99 = vst [vmem:[%s76] ss:$4 sm:$0xff] %v53
    %100 = vst [vmem:[%s78] ss:$4 sm:$0xff] %v55
    %101 = vst [vmem:[%s80] ss:$4 sm:$0xff] %v57
    %102 = vst [vmem:[%s82] ss:$4 sm:$0xff] %v52
    %103 = vst [vmem:[%s84] ss:$4 sm:$0xff] %v54
    %104 = vst [vmem:[%s86] ss:$4 sm:$0xff] %v56
    %105 = vst [vmem:[%s88] ss:$4 sm:$0xff] %v58
    %v106 = vld.sshfl [vmem:[#allocation1] sm:$0xff pattern:$0x73625140]
    %v107 = vld.sshfl [vmem:[#allocation1 + $0x8] sm:$0xff pattern:$0x73625140]
    %v108 = vld.sshfl [vmem:[#allocation1 + $0x10] sm:$0xff pattern:$0x73625140]
    %v109 = vld.sshfl [vmem:[#allocation1 + $0x18] sm:$0xff pattern:$0x73625140]
    %v110 = vld.sshfl [vmem:[#allocation1 + $0x20] sm:$0xff pattern:$0x73625140]
    %v111 = vld.sshfl [vmem:[#allocation1 + $0x28] sm:$0xff pattern:$0x73625140]
    %v112 = vld.sshfl [vmem:[#allocation1 + $0x30] sm:$0xff pattern:$0x73625140]
    %v113 = vld.sshfl [vmem:[#allocation1 + $0x38] sm:$0xff pattern:$0x73625140]
    %v130 = vpack.c.bf16 %v106, %v90
    %v131 = vpack.c.bf16 %v107, %v91
    %v132 = vpack.c.bf16 %v108, %v92
    %v133 = vpack.c.bf16 %v109, %v93
    %v134 = vpack.c.bf16 %v110, %v94
    %v135 = vpack.c.bf16 %v111, %v95
    %v136 = vpack.c.bf16 %v112, %v96
    %v137 = vpack.c.bf16 %v113, %v97
    %v138 = vld [vmem:[#allocation2] sm:$0xf]
    %v139 = vld [vmem:[#allocation2 + $0x4] sm:$0xf]
    %v140 = vld [vmem:[#allocation2 + $0x8] sm:$0xf]
    %v141 = vld [vmem:[#allocation2 + $0xc] sm:$0xf]
    %v142 = vld [vmem:[#allocation2 + $0x10] sm:$0xf]
    %v143 = vld [vmem:[#allocation2 + $0x14] sm:$0xf]
    %v144 = vld [vmem:[#allocation2 + $0x18] sm:$0xf]
    %v145 = vld [vmem:[#allocation2 + $0x1c] sm:$0xf]
    %v146 = vld [vmem:[#allocation2 + $0x20] sm:$0xf]
    %v147 = vld [vmem:[#allocation2 + $0x24] sm:$0xf]
    %v148 = vld [vmem:[#allocation2 + $0x28] sm:$0xf]
    %v149 = vld [vmem:[#allocation2 + $0x2c] sm:$0xf]
    %v150 = vld [vmem:[#allocation2 + $0x30] sm:$0xf]
    %v151 = vld [vmem:[#allocation2 + $0x34] sm:$0xf]
    %v152 = vld [vmem:[#allocation2 + $0x38] sm:$0xf]
    %v153 = vld [vmem:[#allocation2 + $0x3c] sm:$0xf]
    %v154 = vld [vmem:[#allocation2 + $0x40] sm:$0xf]
    %v155 = vld [vmem:[#allocation2 + $0x44] sm:$0xf]
    %v156 = vld [vmem:[#allocation2 + $0x48] sm:$0xf]
    %v157 = vld [vmem:[#allocation2 + $0x4c] sm:$0xf]
    %v158 = vld [vmem:[#allocation2 + $0x50] sm:$0xf]
    %v159 = vld [vmem:[#allocation2 + $0x54] sm:$0xf]
    %v160 = vld [vmem:[#allocation2 + $0x58] sm:$0xf]
    %v161 = vld [vmem:[#allocation2 + $0x5c] sm:$0xf]
    %v162 = vld [vmem:[#allocation2 + $0x60] sm:$0xf]
    %v163 = vld [vmem:[#allocation2 + $0x64] sm:$0xf]
    %v164 = vld [vmem:[#allocation2 + $0x68] sm:$0xf]
    %v165 = vld [vmem:[#allocation2 + $0x6c] sm:$0xf]
    %v166 = vld [vmem:[#allocation2 + $0x70] sm:$0xf]
    %v167 = vld [vmem:[#allocation2 + $0x74] sm:$0xf]
    %v168 = vld [vmem:[#allocation2 + $0x78] sm:$0xf]
    %v169 = vld [vmem:[#allocation2 + $0x7c] sm:$0xf]
    %v170 = vld [vmem:[#allocation2 + $0x80] sm:$0xf]
    %v171 = vld [vmem:[#allocation2 + $0x84] sm:$0xf]
    %v172 = vld [vmem:[#allocation2 + $0x88] sm:$0xf]
    %v173 = vld [vmem:[#allocation2 + $0x8c] sm:$0xf]
    %v174 = vld [vmem:[#allocation2 + $0x90] sm:$0xf]
    %v175 = vld [vmem:[#allocation2 + $0x94] sm:$0xf]
    %v176 = vld [vmem:[#allocation2 + $0x98] sm:$0xf]
    %v177 = vld [vmem:[#allocation2 + $0x9c] sm:$0xf]
    %v178 = vld [vmem:[#allocation2 + $0xa0] sm:$0xf]
    %v179 = vld [vmem:[#allocation2 + $0xa4] sm:$0xf]
    %v180 = vld [vmem:[#allocation2 + $0xa8] sm:$0xf]
    %v181 = vld [vmem:[#allocation2 + $0xac] sm:$0xf]
    %v182 = vld [vmem:[#allocation2 + $0xb0] sm:$0xf]
    %v183 = vld [vmem:[#allocation2 + $0xb4] sm:$0xf]
    %v184 = vld [vmem:[#allocation2 + $0xb8] sm:$0xf]
    %v185 = vld [vmem:[#allocation2 + $0xbc] sm:$0xf]
    %v186 = vld [vmem:[#allocation2 + $0xc0] sm:$0xf]
    %v187 = vld [vmem:[#allocation2 + $0xc4] sm:$0xf]
    %v188 = vld [vmem:[#allocation2 + $0xc8] sm:$0xf]
    %v189 = vld [vmem:[#allocation2 + $0xcc] sm:$0xf]
    %v190 = vld [vmem:[#allocation2 + $0xd0] sm:$0xf]
    %v191 = vld [vmem:[#allocation2 + $0xd4] sm:$0xf]
    %v192 = vld [vmem:[#allocation2 + $0xd8] sm:$0xf]
    %v193 = vld [vmem:[#allocation2 + $0xdc] sm:$0xf]
    %v194 = vld [vmem:[#allocation2 + $0xe0] sm:$0xf]
    %v195 = vld [vmem:[#allocation2 + $0xe4] sm:$0xf]
    %v196 = vld [vmem:[#allocation2 + $0xe8] sm:$0xf]
    %v197 = vld [vmem:[#allocation2 + $0xec] sm:$0xf]
    %v198 = vld [vmem:[#allocation2 + $0xf0] sm:$0xf]
    %v199 = vld [vmem:[#allocation2 + $0xf4] sm:$0xf]
    %v200 = vld [vmem:[#allocation2 + $0xf8] sm:$0xf]
    %v201 = vld [vmem:[#allocation2 + $0xfc] sm:$0xf]
    %v202 = vld [vmem:[#allocation2 + $0x100] sm:$0xf]
    %v203 = vld [vmem:[#allocation2 + $0x104] sm:$0xf]
    %v204 = vld [vmem:[#allocation2 + $0x108] sm:$0xf]
    %v205 = vld [vmem:[#allocation2 + $0x10c] sm:$0xf]
    %v206 = vld [vmem:[#allocation2 + $0x110] sm:$0xf]
    %v207 = vld [vmem:[#allocation2 + $0x114] sm:$0xf]
    %v208 = vld [vmem:[#allocation2 + $0x118] sm:$0xf]
    %v209 = vld [vmem:[#allocation2 + $0x11c] sm:$0xf]
    %v210 = vld [vmem:[#allocation2 + $0x120] sm:$0xf]
    %v211 = vld [vmem:[#allocation2 + $0x124] sm:$0xf]
    %v212 = vld [vmem:[#allocation2 + $0x128] sm:$0xf]
    %v213 = vld [vmem:[#allocation2 + $0x12c] sm:$0xf]
    %v214 = vld [vmem:[#allocation2 + $0x130] sm:$0xf]
    %v215 = vld [vmem:[#allocation2 + $0x134] sm:$0xf]
    %v216 = vld [vmem:[#allocation2 + $0x138] sm:$0xf]
    %v217 = vld [vmem:[#allocation2 + $0x13c] sm:$0xf]
    %v218 = vld [vmem:[#allocation2 + $0x140] sm:$0xf]
    %v219 = vld [vmem:[#allocation2 + $0x144] sm:$0xf]
    %v220 = vld [vmem:[#allocation2 + $0x148] sm:$0xf]
    %v221 = vld [vmem:[#allocation2 + $0x14c] sm:$0xf]
    %v222 = vld [vmem:[#allocation2 + $0x150] sm:$0xf]
    %v223 = vld [vmem:[#allocation2 + $0x154] sm:$0xf]
    %v224 = vld [vmem:[#allocation2 + $0x158] sm:$0xf]
    %v225 = vld [vmem:[#allocation2 + $0x15c] sm:$0xf]
    %v226 = vld [vmem:[#allocation2 + $0x160] sm:$0xf]
    %v227 = vld [vmem:[#allocation2 + $0x164] sm:$0xf]
    %v228 = vld [vmem:[#allocation2 + $0x168] sm:$0xf]
    %v229 = vld [vmem:[#allocation2 + $0x16c] sm:$0xf]
    %v230 = vld [vmem:[#allocation2 + $0x170] sm:$0xf]
    %v231 = vld [vmem:[#allocation2 + $0x174] sm:$0xf]
    %v232 = vld [vmem:[#allocation2 + $0x178] sm:$0xf]
    %v233 = vld [vmem:[#allocation2 + $0x17c] sm:$0xf]
    %v234 = vld [vmem:[#allocation2 + $0x180] sm:$0xf]
    %v235 = vld [vmem:[#allocation2 + $0x184] sm:$0xf]
    %v236 = vld [vmem:[#allocation2 + $0x188] sm:$0xf]
    %v237 = vld [vmem:[#allocation2 + $0x18c] sm:$0xf]
    %v238 = vld [vmem:[#allocation2 + $0x190] sm:$0xf]
    %v239 = vld [vmem:[#allocation2 + $0x194] sm:$0xf]
    %v240 = vld [vmem:[#allocation2 + $0x198] sm:$0xf]
    %v241 = vld [vmem:[#allocation2 + $0x19c] sm:$0xf]
    %v242 = vld [vmem:[#allocation2 + $0x1a0] sm:$0xf]
    %v243 = vld [vmem:[#allocation2 + $0x1a4] sm:$0xf]
    %v244 = vld [vmem:[#allocation2 + $0x1a8] sm:$0xf]
    %v245 = vld [vmem:[#allocation2 + $0x1ac] sm:$0xf]
    %v246 = vld [vmem:[#allocation2 + $0x1b0] sm:$0xf]
    %v247 = vld [vmem:[#allocation2 + $0x1b4] sm:$0xf]
    %v248 = vld [vmem:[#allocation2 + $0x1b8] sm:$0xf]
    %v249 = vld [vmem:[#allocation2 + $0x1bc] sm:$0xf]
    %v250 = vld [vmem:[#allocation2 + $0x1c0] sm:$0xf]
    %v251 = vld [vmem:[#allocation2 + $0x1c4] sm:$0xf]
    %v252 = vld [vmem:[#allocation2 + $0x1c8] sm:$0xf]
    %v253 = vld [vmem:[#allocation2 + $0x1cc] sm:$0xf]
    %v254 = vld [vmem:[#allocation2 + $0x1d0] sm:$0xf]
    %v255 = vld [vmem:[#allocation2 + $0x1d4] sm:$0xf]
    %v256 = vld [vmem:[#allocation2 + $0x1d8] sm:$0xf]
    %v257 = vld [vmem:[#allocation2 + $0x1dc] sm:$0xf]
    %v258 = vld [vmem:[#allocation2 + $0x1e0] sm:$0xf]
    %v259 = vld [vmem:[#allocation2 + $0x1e4] sm:$0xf]
    %v260 = vld [vmem:[#allocation2 + $0x1e8] sm:$0xf]
    %v261 = vld [vmem:[#allocation2 + $0x1ec] sm:$0xf]
    %v262 = vld [vmem:[#allocation2 + $0x1f0] sm:$0xf]
    %v263 = vld [vmem:[#allocation2 + $0x1f4] sm:$0xf]
    %v264 = vld [vmem:[#allocation2 + $0x1f8] sm:$0xf]
    %v265 = vld [vmem:[#allocation2 + $0x1fc] sm:$0xf]
    %v266 = vld [vmem:[%s2] sm:$0x1]
    %v268 = vperm.slane %v266, 0
    %v398 = vunpack.c.l.b16 %v138
    %v399 = vunpack.c.l.b16 %v139
    %v400 = vunpack.c.l.b16 %v140
    %v401 = vunpack.c.l.b16 %v141
    %v402 = vunpack.c.l.b16 %v142
    %v403 = vunpack.c.l.b16 %v143
    %v404 = vunpack.c.l.b16 %v144
    %v405 = vunpack.c.l.b16 %v145
    %v406 = vunpack.c.l.b16 %v146
    %v407 = vunpack.c.l.b16 %v147
    %v408 = vunpack.c.l.b16 %v148
    %v409 = vunpack.c.l.b16 %v149
    %v410 = vunpack.c.l.b16 %v150
    %v411 = vunpack.c.l.b16 %v151
    %v412 = vunpack.c.l.b16 %v152
    %v413 = vunpack.c.l.b16 %v153
    %v414 = vunpack.c.l.b16 %v154
    %v415 = vunpack.c.l.b16 %v155
    %v416 = vunpack.c.l.b16 %v156
    %v417 = vunpack.c.l.b16 %v157
    %v418 = vunpack.c.l.b16 %v158
    %v419 = vunpack.c.l.b16 %v159
    %v420 = vunpack.c.l.b16 %v160
    %v421 = vunpack.c.l.b16 %v161
    %v422 = vunpack.c.l.b16 %v162
    %v423 = vunpack.c.l.b16 %v163
    %v424 = vunpack.c.l.b16 %v164
    %v425 = vunpack.c.l.b16 %v165
    %v426 = vunpack.c.l.b16 %v166
    %v427 = vunpack.c.l.b16 %v167
    %v428 = vunpack.c.l.b16 %v168
    %v429 = vunpack.c.l.b16 %v169
    %v430 = vunpack.c.l.b16 %v170
    %v431 = vunpack.c.l.b16 %v171
    %v432 = vunpack.c.l.b16 %v172
    %v433 = vunpack.c.l.b16 %v173
    %v434 = vunpack.c.l.b16 %v174
    %v435 = vunpack.c.l.b16 %v175
    %v436 = vunpack.c.l.b16 %v176
    %v437 = vunpack.c.l.b16 %v177
    %v438 = vunpack.c.l.b16 %v178
    %v439 = vunpack.c.l.b16 %v179
    %v440 = vunpack.c.l.b16 %v180
    %v441 = vunpack.c.l.b16 %v181
    %v442 = vunpack.c.l.b16 %v182
    %v443 = vunpack.c.l.b16 %v183
    %v444 = vunpack.c.l.b16 %v184
    %v445 = vunpack.c.l.b16 %v185
    %v446 = vunpack.c.l.b16 %v186
    %v447 = vunpack.c.l.b16 %v187
    %v448 = vunpack.c.l.b16 %v188
    %v449 = vunpack.c.l.b16 %v189
    %v450 = vunpack.c.l.b16 %v190
    %v451 = vunpack.c.l.b16 %v191
    %v452 = vunpack.c.l.b16 %v192
    %v453 = vunpack.c.l.b16 %v193
    %v454 = vunpack.c.l.b16 %v194
    %v455 = vunpack.c.l.b16 %v195
    %v456 = vunpack.c.l.b16 %v196
    %v457 = vunpack.c.l.b16 %v197
    %v458 = vunpack.c.l.b16 %v198
    %v459 = vunpack.c.l.b16 %v199
    %v460 = vunpack.c.l.b16 %v200
    %v461 = vunpack.c.l.b16 %v201
    %v462 = vunpack.c.l.b16 %v202
    %v463 = vunpack.c.l.b16 %v203
    %v464 = vunpack.c.l.b16 %v204
    %v465 = vunpack.c.l.b16 %v205
    %v466 = vunpack.c.l.b16 %v206
    %v467 = vunpack.c.l.b16 %v207
    %v468 = vunpack.c.l.b16 %v208
    %v469 = vunpack.c.l.b16 %v209
    %v470 = vunpack.c.l.b16 %v210
    %v471 = vunpack.c.l.b16 %v211
    %v472 = vunpack.c.l.b16 %v212
    %v473 = vunpack.c.l.b16 %v213
    %v474 = vunpack.c.l.b16 %v214
    %v475 = vunpack.c.l.b16 %v215
    %v476 = vunpack.c.l.b16 %v216
    %v477 = vunpack.c.l.b16 %v217
    %v478 = vunpack.c.l.b16 %v218
    %v479 = vunpack.c.l.b16 %v219
    %v480 = vunpack.c.l.b16 %v220
    %v481 = vunpack.c.l.b16 %v221
    %v482 = vunpack.c.l.b16 %v222
    %v483 = vunpack.c.l.b16 %v223
    %v484 = vunpack.c.l.b16 %v224
    %v485 = vunpack.c.l.b16 %v225
    %v486 = vunpack.c.l.b16 %v226
    %v487 = vunpack.c.l.b16 %v227
    %v488 = vunpack.c.l.b16 %v228
    %v489 = vunpack.c.l.b16 %v229
    %v490 = vunpack.c.l.b16 %v230
    %v491 = vunpack.c.l.b16 %v231
    %v492 = vunpack.c.l.b16 %v232
    %v493 = vunpack.c.l.b16 %v233
    %v494 = vunpack.c.l.b16 %v234
    %v495 = vunpack.c.l.b16 %v235
    %v496 = vunpack.c.l.b16 %v236
    %v497 = vunpack.c.l.b16 %v237
    %v498 = vunpack.c.l.b16 %v238
    %v499 = vunpack.c.l.b16 %v239
    %v500 = vunpack.c.l.b16 %v240
    %v501 = vunpack.c.l.b16 %v241
    %v502 = vunpack.c.l.b16 %v242
    %v503 = vunpack.c.l.b16 %v243
    %v504 = vunpack.c.l.b16 %v244
    %v505 = vunpack.c.l.b16 %v245
    %v506 = vunpack.c.l.b16 %v246
    %v507 = vunpack.c.l.b16 %v247
    %v508 = vunpack.c.l.b16 %v248
    %v509 = vunpack.c.l.b16 %v249
    %v510 = vunpack.c.l.b16 %v250
    %v511 = vunpack.c.l.b16 %v251
    %v512 = vunpack.c.l.b16 %v252
    %v513 = vunpack.c.l.b16 %v253
    %v514 = vunpack.c.l.b16 %v254
    %v515 = vunpack.c.l.b16 %v255
    %v516 = vunpack.c.l.b16 %v256
    %v517 = vunpack.c.l.b16 %v257
    %v518 = vunpack.c.l.b16 %v258
    %v519 = vunpack.c.l.b16 %v259
    %v520 = vunpack.c.l.b16 %v260
    %v521 = vunpack.c.l.b16 %v261
    %v522 = vunpack.c.l.b16 %v262
    %v523 = vunpack.c.l.b16 %v263
    %v524 = vunpack.c.l.b16 %v264
    %v525 = vunpack.c.l.b16 %v265
    %v526 = vpack.c.b16 %v399, %v398
    %v527 = vpack.c.b16 %v401, %v400
    %v528 = vpack.c.b16 %v403, %v402
    %v529 = vpack.c.b16 %v405, %v404
    %v530 = vpack.c.b16 %v407, %v406
    %v531 = vpack.c.b16 %v409, %v408
    %v532 = vpack.c.b16 %v411, %v410
    %v533 = vpack.c.b16 %v413, %v412
    %v534 = vpack.c.b16 %v415, %v414
    %v535 = vpack.c.b16 %v417, %v416
    %v536 = vpack.c.b16 %v419, %v418
    %v537 = vpack.c.b16 %v421, %v420
    %v538 = vpack.c.b16 %v423, %v422
    %v539 = vpack.c.b16 %v425, %v424
    %v540 = vpack.c.b16 %v427, %v426
    %v541 = vpack.c.b16 %v429, %v428
    %v542 = vpack.c.b16 %v431, %v430
    %v543 = vpack.c.b16 %v433, %v432
    %v544 = vpack.c.b16 %v435, %v434
    %v545 = vpack.c.b16 %v437, %v436
    %v546 = vpack.c.b16 %v439, %v438
    %v547 = vpack.c.b16 %v441, %v440
    %v548 = vpack.c.b16 %v443, %v442
    %v549 = vpack.c.b16 %v445, %v444
    %v550 = vpack.c.b16 %v447, %v446
    %v551 = vpack.c.b16 %v449, %v448
    %v552 = vpack.c.b16 %v451, %v450
    %v553 = vpack.c.b16 %v453, %v452
    %v554 = vpack.c.b16 %v455, %v454
    %v555 = vpack.c.b16 %v457, %v456
    %v556 = vpack.c.b16 %v459, %v458
    %v557 = vpack.c.b16 %v461, %v460
    %v558 = vpack.c.b16 %v463, %v462
    %v559 = vpack.c.b16 %v465, %v464
    %v560 = vpack.c.b16 %v467, %v466
    %v561 = vpack.c.b16 %v469, %v468
    %v562 = vpack.c.b16 %v471, %v470
    %v563 = vpack.c.b16 %v473, %v472
    %v564 = vpack.c.b16 %v475, %v474
    %v565 = vpack.c.b16 %v477, %v476
    %v566 = vpack.c.b16 %v479, %v478
    %v567 = vpack.c.b16 %v481, %v480
    %v568 = vpack.c.b16 %v483, %v482
    %v569 = vpack.c.b16 %v485, %v484
    %v570 = vpack.c.b16 %v487, %v486
    %v571 = vpack.c.b16 %v489, %v488
    %v572 = vpack.c.b16 %v491, %v490
    %v573 = vpack.c.b16 %v493, %v492
    %v574 = vpack.c.b16 %v495, %v494
    %v575 = vpack.c.b16 %v497, %v496
    %v576 = vpack.c.b16 %v499, %v498
    %v577 = vpack.c.b16 %v501, %v500
    %v578 = vpack.c.b16 %v503, %v502
    %v579 = vpack.c.b16 %v505, %v504
    %v580 = vpack.c.b16 %v507, %v506
    %v581 = vpack.c.b16 %v509, %v508
    %v582 = vpack.c.b16 %v511, %v510
    %v583 = vpack.c.b16 %v513, %v512
    %v584 = vpack.c.b16 %v515, %v514
    %v585 = vpack.c.b16 %v517, %v516
    %v586 = vpack.c.b16 %v519, %v518
    %v587 = vpack.c.b16 %v521, %v520
    %v588 = vpack.c.b16 %v523, %v522
    %v589 = vpack.c.b16 %v525, %v524
    %654 = vmatpush.bf16.msra.mxu0 %v533
    %655 = vmatpush.bf16.msra.mxu0 %v532
    %656 = vmatpush.bf16.msra.mxu0 %v531
    %657 = vmatpush.bf16.msra.mxu0 %v530
    %658 = vmatpush.bf16.msra.mxu0 %v529
    %659 = vmatpush.bf16.msra.mxu0 %v528
    %660 = vmatpush.bf16.msra.mxu0 %v527
    %661 = vmatpush.bf16.msra.mxu0 %v526
    %662 = vmatmul.bf16.gmra.mxu0 %v130
    %v663 = vpop.f32.mrf.mxu0
    %v664 = vadd.f32 %v268, %v663
    %v665 = vpop.f32.mrf.mxu0
    %v666 = vadd.f32 %v268, %v665
    %667 = vdwg.mxu0
    %668 = vmatpush.bf16.msra.mxu0 %v541
    %669 = vmatpush.bf16.msra.mxu0 %v540
    %670 = vmatpush.bf16.msra.mxu0 %v539
    %671 = vmatpush.bf16.msra.mxu0 %v538
    %672 = vmatpush.bf16.msra.mxu0 %v537
    %673 = vmatpush.bf16.msra.mxu0 %v536
    %674 = vmatpush.bf16.msra.mxu0 %v535
    %675 = vmatpush.bf16.msra.mxu0 %v534
    %676 = vmatmul.bf16.gmra.mxu0 %v131
    %v677 = vpop.f32.mrf.mxu0
    %v678 = vadd.f32 %v664, %v677
    %v679 = vpop.f32.mrf.mxu0
    %v680 = vadd.f32 %v666, %v679
    %681 = vdwg.mxu0
    %682 = vmatpush.bf16.msra.mxu0 %v549
    %683 = vmatpush.bf16.msra.mxu0 %v548
    %684 = vmatpush.bf16.msra.mxu0 %v547
    %685 = vmatpush.bf16.msra.mxu0 %v546
    %686 = vmatpush.bf16.msra.mxu0 %v545
    %687 = vmatpush.bf16.msra.mxu0 %v544
    %688 = vmatpush.bf16.msra.mxu0 %v543
    %689 = vmatpush.bf16.msra.mxu0 %v542
    %690 = vmatmul.bf16.gmra.mxu0 %v132
    %v691 = vpop.f32.mrf.mxu0
    %v692 = vadd.f32 %v678, %v691
    %v693 = vpop.f32.mrf.mxu0
    %v694 = vadd.f32 %v680, %v693
    %695 = vdwg.mxu0
    %696 = vmatpush.bf16.msra.mxu0 %v557
    %697 = vmatpush.bf16.msra.mxu0 %v556
    %698 = vmatpush.bf16.msra.mxu0 %v555
    %699 = vmatpush.bf16.msra.mxu0 %v554
    %700 = vmatpush.bf16.msra.mxu0 %v553
    %701 = vmatpush.bf16.msra.mxu0 %v552
    %702 = vmatpush.bf16.msra.mxu0 %v551
    %703 = vmatpush.bf16.msra.mxu0 %v550
    %704 = vmatmul.bf16.gmra.mxu0 %v133
    %v705 = vpop.f32.mrf.mxu0
    %v706 = vadd.f32 %v692, %v705
    %v707 = vpop.f32.mrf.mxu0
    %v708 = vadd.f32 %v694, %v707
    %709 = vdwg.mxu0
    %710 = vmatpush.bf16.msra.mxu0 %v565
    %711 = vmatpush.bf16.msra.mxu0 %v564
    %712 = vmatpush.bf16.msra.mxu0 %v563
    %713 = vmatpush.bf16.msra.mxu0 %v562
    %714 = vmatpush.bf16.msra.mxu0 %v561
    %715 = vmatpush.bf16.msra.mxu0 %v560
    %716 = vmatpush.bf16.msra.mxu0 %v559
    %717 = vmatpush.bf16.msra.mxu0 %v558
    %718 = vmatmul.bf16.gmra.mxu0 %v134
    %v719 = vpop.f32.mrf.mxu0
    %v720 = vadd.f32 %v706, %v719
    %v721 = vpop.f32.mrf.mxu0
    %v722 = vadd.f32 %v708, %v721
    %723 = vdwg.mxu0
    %724 = vmatpush.bf16.msra.mxu0 %v573
    %725 = vmatpush.bf16.msra.mxu0 %v572
    %726 = vmatpush.bf16.msra.mxu0 %v571
    %727 = vmatpush.bf16.msra.mxu0 %v570
    %728 = vmatpush.bf16.msra.mxu0 %v569
    %729 = vmatpush.bf16.msra.mxu0 %v568
    %730 = vmatpush.bf16.msra.mxu0 %v567
    %731 = vmatpush.bf16.msra.mxu0 %v566
    %732 = vmatmul.bf16.gmra.mxu0 %v135
    %v733 = vpop.f32.mrf.mxu0
    %v734 = vadd.f32 %v720, %v733
    %v735 = vpop.f32.mrf.mxu0
    %v736 = vadd.f32 %v722, %v735
    %737 = vdwg.mxu0
    %738 = vmatpush.bf16.msra.mxu0 %v581
    %739 = vmatpush.bf16.msra.mxu0 %v580
    %740 = vmatpush.bf16.msra.mxu0 %v579
    %741 = vmatpush.bf16.msra.mxu0 %v578
    %742 = vmatpush.bf16.msra.mxu0 %v577
    %743 = vmatpush.bf16.msra.mxu0 %v576
    %744 = vmatpush.bf16.msra.mxu0 %v575
    %745 = vmatpush.bf16.msra.mxu0 %v574
    %746 = vmatmul.bf16.gmra.mxu0 %v136
    %v747 = vpop.f32.mrf.mxu0
    %v748 = vadd.f32 %v734, %v747
    %v749 = vpop.f32.mrf.mxu0
    %v750 = vadd.f32 %v736, %v749
    %751 = vdwg.mxu0
    %752 = vmatpush.bf16.msra.mxu0 %v589
    %753 = vmatpush.bf16.msra.mxu0 %v588
    %754 = vmatpush.bf16.msra.mxu0 %v587
    %755 = vmatpush.bf16.msra.mxu0 %v586
    %756 = vmatpush.bf16.msra.mxu0 %v585
    %757 = vmatpush.bf16.msra.mxu0 %v584
    %758 = vmatpush.bf16.msra.mxu0 %v583
    %759 = vmatpush.bf16.msra.mxu0 %v582
    %760 = vmatmul.bf16.gmra.mxu0 %v137
    %v761 = vpop.f32.mrf.mxu0
    %v762 = vadd.f32 %v748, %v761
    %v763 = vpop.f32.mrf.mxu0
    %v764 = vadd.f32 %v750, %v763
    %765 = vdwg.mxu0
    %v766 = vmax.f32 %v762, 0.0
    %v767 = vmax.f32 %v764, 0.0
    %v768 = vpack.c.bf16 %v767, %v766
    %v769 = vld [vmem:[%s3] sm:$0xf]
    %v770 = vld [vmem:[%s3 + $0x4] sm:$0xf]
    %v771 = vld [vmem:[%s3 + $0x8] sm:$0xf]
    %v772 = vld [vmem:[%s3 + $0xc] sm:$0xf]
    %v773 = vld [vmem:[%s3 + $0x10] sm:$0xf]
    %v774 = vld [vmem:[%s3 + $0x14] sm:$0xf]
    %v775 = vld [vmem:[%s3 + $0x18] sm:$0xf]
    %v776 = vld [vmem:[%s3 + $0x1c] sm:$0xf]
    %v777 = vld [vmem:[%s3 + $0x20] sm:$0xf]
    %v778 = vld [vmem:[%s3 + $0x24] sm:$0xf]
    %v779 = vld [vmem:[%s3 + $0x28] sm:$0xf]
    %v780 = vld [vmem:[%s3 + $0x2c] sm:$0xf]
    %v781 = vld [vmem:[%s3 + $0x30] sm:$0xf]
    %v782 = vld [vmem:[%s3 + $0x34] sm:$0xf]
    %v783 = vld [vmem:[%s3 + $0x38] sm:$0xf]
    %v784 = vld [vmem:[%s3 + $0x3c] sm:$0xf]
    %v785 = vld [vmem:[%s4] sm:$0x1]
    %v787 = vperm.slane %v785, 0
    %v805 = vunpack.c.l.b16 %v769
    %v806 = vunpack.c.l.b16 %v770
    %v807 = vunpack.c.l.b16 %v771
    %v808 = vunpack.c.l.b16 %v772
    %v809 = vunpack.c.l.b16 %v773
    %v810 = vunpack.c.l.b16 %v774
    %v811 = vunpack.c.l.b16 %v775
    %v812 = vunpack.c.l.b16 %v776
    %v813 = vunpack.c.l.b16 %v777
    %v814 = vunpack.c.l.b16 %v778
    %v815 = vunpack.c.l.b16 %v779
    %v816 = vunpack.c.l.b16 %v780
    %v817 = vunpack.c.l.b16 %v781
    %v818 = vunpack.c.l.b16 %v782
    %v819 = vunpack.c.l.b16 %v783
    %v820 = vunpack.c.l.b16 %v784
    %v821 = vpack.c.b16 %v806, %v805
    %v822 = vpack.c.b16 %v808, %v807
    %v823 = vpack.c.b16 %v810, %v809
    %v824 = vpack.c.b16 %v812, %v811
    %v825 = vpack.c.b16 %v814, %v813
    %v826 = vpack.c.b16 %v816, %v815
    %v827 = vpack.c.b16 %v818, %v817
    %v828 = vpack.c.b16 %v820, %v819
    %837 = vmatpush.bf16.msra.mxu0 %v828
    %838 = vmatpush.bf16.msra.mxu0 %v827
    %839 = vmatpush.bf16.msra.mxu0 %v826
    %840 = vmatpush.bf16.msra.mxu0 %v825
    %841 = vmatpush.bf16.msra.mxu0 %v824
    %842 = vmatpush.bf16.msra.mxu0 %v823
    %843 = vmatpush.bf16.msra.mxu0 %v822
    %844 = vmatpush.bf16.msra.mxu0 %v821
    %845 = vmatmul.bf16.gmra.mxu0 %v768
    %v846 = vpop.f32.mrf.mxu0
    %v847 = vadd.f32 %v787, %v846
    %v848 = vpop.f32.mrf.mxu0
    %v849 = vadd.f32 %v787, %v848
    %850 = vdwg.mxu0
    %v851 = vmax.f32 %v847, 0.0
    %v852 = vmax.f32 %v849, 0.0
    %v853 = vpack.c.bf16 %v852, %v851
    %v854 = vld [vmem:[%s5] sm:$0xf]
    %v855 = vld [vmem:[%s5 + $0x4] sm:$0xf]
    %v856 = vld [vmem:[%s5 + $0x8] sm:$0xf]
    %v857 = vld [vmem:[%s5 + $0xc] sm:$0xf]
    %v858 = vld [vmem:[%s5 + $0x10] sm:$0xf]
    %v859 = vld [vmem:[%s5 + $0x14] sm:$0xf]
    %v860 = vld [vmem:[%s5 + $0x18] sm:$0xf]
    %v861 = vld [vmem:[%s5 + $0x1c] sm:$0xf]
    %v862 = vld [vmem:[%s5 + $0x20] sm:$0xf]
    %v863 = vld [vmem:[%s5 + $0x24] sm:$0xf]
    %v864 = vld [vmem:[%s5 + $0x28] sm:$0xf]
    %v865 = vld [vmem:[%s5 + $0x2c] sm:$0xf]
    %v866 = vld [vmem:[%s5 + $0x30] sm:$0xf]
    %v867 = vld [vmem:[%s5 + $0x34] sm:$0xf]
    %v868 = vld [vmem:[%s5 + $0x38] sm:$0xf]
    %v869 = vld [vmem:[%s5 + $0x3c] sm:$0xf]
    %v886 = vunpack.c.l.b16 %v854
    %v887 = vunpack.c.l.b16 %v855
    %v888 = vunpack.c.l.b16 %v856
    %v889 = vunpack.c.l.b16 %v857
    %v890 = vunpack.c.l.b16 %v858
    %v891 = vunpack.c.l.b16 %v859
    %v892 = vunpack.c.l.b16 %v860
    %v893 = vunpack.c.l.b16 %v861
    %v894 = vunpack.c.l.b16 %v862
    %v895 = vunpack.c.l.b16 %v863
    %v896 = vunpack.c.l.b16 %v864
    %v897 = vunpack.c.l.b16 %v865
    %v898 = vunpack.c.l.b16 %v866
    %v899 = vunpack.c.l.b16 %v867
    %v900 = vunpack.c.l.b16 %v868
    %v901 = vunpack.c.l.b16 %v869
    %v902 = vpack.c.b16 %v887, %v886
    %v903 = vpack.c.b16 %v889, %v888
    %v904 = vpack.c.b16 %v891, %v890
    %v905 = vpack.c.b16 %v893, %v892
    %v906 = vpack.c.b16 %v895, %v894
    %v907 = vpack.c.b16 %v897, %v896
    %v908 = vpack.c.b16 %v899, %v898
    %v909 = vpack.c.b16 %v901, %v900
    %918 = vmatpush.bf16.msra.mxu0 %v909
    %919 = vmatpush.bf16.msra.mxu0 %v908
    %920 = vmatpush.bf16.msra.mxu0 %v907
    %921 = vmatpush.bf16.msra.mxu0 %v906
    %922 = vmatpush.bf16.msra.mxu0 %v905
    %923 = vmatpush.bf16.msra.mxu0 %v904
    %924 = vmatpush.bf16.msra.mxu0 %v903
    %925 = vmatpush.bf16.msra.mxu0 %v902
    %926 = vmatmul.bf16.gmra.mxu0 %v853
    %v927 = vpop.f32.mrf.mxu0
    %v928 = vadd.f32 0.0, %v927
    %v929 = vpop.f32.mrf.mxu0
    %v930 = vadd.f32 0.0, %v929
    %931 = vdwg.mxu0
    %v932 = vld [vmem:[%s6] sm:$0x1]
    %v934 = vperm.slane %v932, 0
    %v936 = vadd.f32 %v928, %v934
    %v937 = vadd.f32 %v930, %v934
    %vm938 = vcmask 80896
    %939 = vst.msk [vmem:[#allocation5] sm:$0xff] %vm938, %v936
    %940 = vst.msk [vmem:[#allocation5 + $0x8] sm:$0xff] %vm938, %v937
    // Predicated region
    $region34: #{mynetwork_forward.1} parent=1 // pred_check
      _
    $region35: #{mynetwork_forward.1} parent=1 // pred_check_branch
      %942 = sbr.rel (0) target = $region37
    $region36: #{mynetwork_forward.1} parent=1 // pred_region
      %944 = vsyncadd [#allocation4], 224
      %s945 = sshll.u32 [#allocation5], 4
      %s946 = int_to_ptr.vmem [resolvable:$true] %s945
      %s947 = sshll.u32 %s7, 4
      %s948 = int_to_ptr.hbm [resolvable:$true] %s947
      %953 = dma.vmem_to_hbm [thread:$0]  %s946, 32, %s948, [#allocation4], 32, 32, 2
    $region37: #{mynetwork_forward.1} parent=1 // pred_fallthru
      _
    // Predicated region
    $region38: #{mynetwork_forward.1} parent=1 // pred_check
      _
    $region39: #{mynetwork_forward.1} parent=1 // pred_check_branch
      %955 = sbr.rel (0) target = $region41
    $region40: #{mynetwork_forward.1} parent=1 // pred_region
      %957 = dma.done [#allocation4], 256
    $region41: #{mynetwork_forward.1} parent=1 // pred_fallthru
      _
    %958 = vsyncpa [#allocation3], 1
    %959 = vsyncpa [#allocation4], 1

</llo_original>
